<compile_context>
chip_gen: v7x
topology: tpu7x:2x2x1
jax: 0.10.0
libtpu: 0.0.40
codegen_flags: <defaults>
</compile_context>

<pallas_src>
import numpy as np
import jax
import jax.numpy as jnp
from jax.experimental import pallas as pl
from jax.experimental.pallas import tpu as pltpu


# ----------------------------- Pallas kernel ------------------------------ #
def _upconv_matmul_kernel(x_ref, w_ref, o_ref):
    # x_ref: (Cin, TP)  pixel tile, pixels on the lane axis
    # w_ref: (CO,  Cin) full transposed-conv weight, CO = Cout*kh*kw
    # o_ref: (CO,  TP)  lane-dense output tile
    o_ref[...] = jnp.dot(
        w_ref[...], x_ref[...], preferred_element_type=jnp.float32
    ).astype(o_ref.dtype)


def _pick_pixel_tile(hw, cin, co, itemsize, vmem_budget=40 * 1024 * 1024):
    """Largest legal pixel tile that fits a conservative VMEM budget."""
    def fits(t):
        # 2x double-buffered x + out tiles, 2x weight buffer.
        return (2 * (cin + co) * t + 2 * cin * co) * itemsize <= vmem_budget

    tp = 128
    for cand in (256, 512, 1024, 2048):
        if fits(cand):
            tp = cand
    if hw <= tp and fits(hw):
        # Single block spanning the full pixel axis (always layout-legal:
        # block dim == full array dim).
        return hw
    return tp  # multiple of 128; cdiv grid masks the partial last block


def upconv_pallas(x, w_mat):
    """x: (N, Cin, HW), w_mat: (CO, Cin) -> (N, CO, HW) via MXU."""
    N, cin, hw = x.shape
    co, _ = w_mat.shape
    tp = _pick_pixel_tile(hw, cin, co, jnp.dtype(x.dtype).itemsize)
    n_ptiles = pl.cdiv(hw, tp)

    return pl.pallas_call(
        _upconv_matmul_kernel,
        out_shape=jax.ShapeDtypeStruct((N, co, hw), x.dtype),
        grid_spec=pltpu.PrefetchScalarGridSpec(
            num_scalar_prefetch=0,
            grid=(N, n_ptiles),
            in_specs=[
                pl.BlockSpec((None, cin, tp), lambda n, i: (n, 0, i)),
                pl.BlockSpec((co, cin), lambda n, i: (0, 0)),
            ],
            out_specs=pl.BlockSpec((None, co, tp), lambda n, i: (n, 0, i)),
        ),
        compiler_params=pltpu.CompilerParams(
            dimension_semantics=("parallel", "parallel"),
            vmem_limit_bytes=48 * 1024 * 1024,
        ),
    )(x, w_mat)


# ------------------------------ Module wrapper ----------------------------- #
def unetr_up_block_plus_dyqkv5_forward(inp, skip, w_transp):
    """Pallas implementation of UnetrUpBlockPlusDyQKV5.forward (has_outCNN=False).

    inp:      (N, Cin, H, W)        NCHW
    skip:     (N, Cout, 2H, 2W)     NCHW
    w_transp: (Cin, Cout, kh, kw)   ConvTranspose2d weight, kh = kw = stride = 2
    returns:  (N, 2*Cout, 2H, 2W)   NCHW
    """
    N, Cin, H, W = inp.shape
    Cin_w, Cout, kh, kw = w_transp.shape
    assert Cin == Cin_w
    HW = H * W
    CO = Cout * kh * kw

    # NCHW -> (N, Cin, H*W): free reshape, no transpose / extra HBM pass.
    x = inp.reshape(N, Cin, HW)
    # (Cin, Cout, kh, kw) -> (CO, Cin); row index ordered (o, dh, dw). Tiny.
    w_mat = jnp.transpose(w_transp.reshape(Cin, CO), (1, 0))

    # Hot path: lane-dense MXU matmul, pixels on the lane axis.
    y = upconv_pallas(x, w_mat)                       # (N, CO, HW), CO=(o,dh,dw)

    # Scatter to NCHW:  out[n, o, kh*h+dh, kw*w+dw] = y[n, (o,dh,dw), h*W+w]
    y = y.reshape(N, Cout, kh, kw, H, W)
    y = jnp.transpose(y, (0, 1, 4, 2, 5, 3)).reshape(N, Cout, kh * H, kw * W)

    # torch.cat((y, skip), dim=1) — fused with the transpose by XLA under jit.
    return jnp.concatenate([y, skip], axis=1)


# --------------------------------- Driver ---------------------------------- #
if __name__ == "__main__":
    # Small shapes: spatial_dims=2, in_channels=8, out_channels=4,
    # upsample_kernel_size = upsample_stride = 2.
    N, Cin, H, W = 2, 8, 16, 16
    Cout, K = 4, 2

    key = jax.random.PRNGKey(0)
    k_inp, k_skip, k_w = jax.random.split(key, 3)

    inp = jax.random.normal(k_inp, (N, Cin, H, W), dtype=jnp.float32)
    skip = jax.random.normal(k_skip, (N, Cout, H * K, W * K), dtype=jnp.float32)
    # ConvTranspose2d weight: (in_channels, out_channels, kh, kw), bias=False.
    w_transp = jax.random.normal(k_w, (Cin, Cout, K, K), dtype=jnp.float32) * 0.1

    fwd = jax.jit(unetr_up_block_plus_dyqkv5_forward)
    out = jax.block_until_ready(fwd(inp, skip, w_transp))

    # Pure-JAX reference for the transposed conv + concat.
    ref_y = jnp.einsum("nchw,cokl->nohkwl", inp, w_transp).reshape(
        N, Cout, H * K, W * K
    )
    ref = jnp.concatenate([ref_y, skip], axis=1)

    assert out.shape == (N, 2 * Cout, H * K, W * K), out.shape
    np.testing.assert_allclose(np.asarray(out), np.asarray(ref), rtol=1e-5, atol=1e-5)

    print("KERNEL_OK")
</pallas_src>

<mosaic_0001>
module attributes {stable_mosaic.version = 11 : i64} {
  func.func @_upconv_matmul_kernel(%arg0: i32, %arg1: i32, %arg2: memref<1x8x256xf32, #tpu.memory_space<vmem>>, %arg3: memref<16x8xf32, #tpu.memory_space<vmem>>, %arg4: memref<1x16x256xf32, #tpu.memory_space<vmem>>) attributes {dimension_semantics = [#tpu.dimension_semantics<parallel>, #tpu.dimension_semantics<parallel>], iteration_bounds = array<i64: 2, 1>, scalar_prefetch = 0 : i64, scratch_operands = 0 : i64, tpu.core_type = #tpu.core_type<tc>, window_params = [{transform_indices = @transform_0, window_bounds = array<i64: 1, 8, 256>}, {pipeline_mode = #tpu.pipeline_mode<synchronous>, transform_indices = @transform_1, window_bounds = array<i64: 16, 8>}, {transform_indices = @transform_2, window_bounds = array<i64: 1, 16, 256>}]} {
    %c0 = arith.constant 0 : index
    %c0_0 = arith.constant 0 : index
    %0 = vector.load %arg3[%c0, %c0_0] : memref<16x8xf32, #tpu.memory_space<vmem>>, vector<16x8xf32>
    %c0_1 = arith.constant 0 : index
    %c0_2 = arith.constant 0 : index
    %c0_3 = arith.constant 0 : index
    %1 = vector.load %arg2[%c0_1, %c0_2, %c0_3] : memref<1x8x256xf32, #tpu.memory_space<vmem>>, vector<1x8x256xf32>
    %2 = vector.shape_cast %1 : vector<1x8x256xf32> to vector<8x256xf32>
    %cst = arith.constant dense<0.000000e+00> : vector<16x256xf32>
    %3 = tpu.matmul %0, %2, %cst {dimension_numbers = #tpu.dot_dimension_numbers<[1], [0], [0], [1], [0, 0, 1, 1], [], []>} : vector<16x8xf32>, vector<8x256xf32>, vector<16x256xf32> -> vector<16x256xf32>
    %c0_4 = arith.constant 0 : index
    %c0_5 = arith.constant 0 : index
    %c0_6 = arith.constant 0 : index
    %4 = vector.load %arg4[%c0_4, %c0_5, %c0_6] : memref<1x16x256xf32, #tpu.memory_space<vmem>>, vector<1x16x256xf32>
    %5 = vector.shape_cast %4 : vector<1x16x256xf32> to vector<16x256xf32>
    %6 = vector.shape_cast %3 : vector<16x256xf32> to vector<1x16x256xf32>
    tpu.vector_store %arg4[%c0_4, %c0_5, %c0_6], %6 {strides = array<i32>} : memref<1x16x256xf32, #tpu.memory_space<vmem>>, vector<1x16x256xf32>,
    return
  }
  func.func @transform_0(%arg0: i32, %arg1: i32) -> (i32, i32, i32) {
    %c0_i32 = arith.constant 0 : i32
    %c0_i32_0 = arith.constant 0 : i32
    return %arg0, %c0_i32, %arg1 : i32, i32, i32
  }
  func.func @transform_1(%arg0: i32, %arg1: i32) -> (i32, i32) {
    %c0_i32 = arith.constant 0 : i32
    %c0_i32_0 = arith.constant 0 : i32
    %c0_i32_1 = arith.constant 0 : i32
    return %c0_i32, %c0_i32_0 : i32, i32
  }
  func.func @transform_2(%arg0: i32, %arg1: i32) -> (i32, i32, i32) {
    %c0_i32 = arith.constant 0 : i32
    %c0_i32_0 = arith.constant 0 : i32
    return %arg0, %c0_i32, %arg1 : i32, i32, i32
  }
}

</mosaic_0001>

<llo_original>
// kernel: unetr_up_block_plus_dyqkv5_forward.1
$region0: #{unetr_up_block_plus_dyqkv5_forward.1}
  #allocation0 [shape = 'u32[]', space=smem, size = 0x4, offset = 0x4, fixed_abs, tag = 'smem constant byte address 0x4 - core index']
  #allocation1 [shape = 'u32[144,128]{1,0:T(1,128)}', space=vmem, size = 0x12000, scoped, tag = 'internal scratch']
  %s0 = inlined_call_operand.vmem [shape: f32[2,8,256], index: 0, kind: input, shape index: {}]
  %s1 = inlined_call_operand.vmem [shape: f32[16,8], index: 1, kind: input, shape index: {}]
  %s2 = inlined_call_operand.vmem [shape: f32[2,16,256], index: 2, kind: output, shape index: {}]
  %s3 = sld [smem:[#allocation0]]
  $region41: #{unetr_up_block_plus_dyqkv5_forward.1} parent=0
    _
  %s5 = ssub.s32 1, %s3
  %s6 = scalar_select 0, %s5, %s3
  loop: start=0, step=1, limit=4
  $region2: #{unetr_up_block_plus_dyqkv5_forward.1} parent=0 // loop_pre_header
    _
  $region3: #{unetr_up_block_plus_dyqkv5_forward.1} parent=0 // loop_header
    %s8 = sphi 0, %s12
    %p9 = scmp.ge.s32.totalorder %s8, 4
    %s15 = sphi 0, %s27
    %s16 = sphi 0, %s23
    %s17 = sphi 0, %s15
    %s18 = sphi 0, %s16
    %s19 = sphi 0, %s17
    %s20 = sphi 0, %s18
    %s32 = sphi 0, %s34
    %s35 = sphi 0, %s32
    %s36 = sphi 0, %s35
    %s52 = sphi 0, %s36
    %s56 = sphi 0, %s56
    %s58 = sphi 0, %s56
    %s59 = sphi 0, %s58
    %s73 = sphi 0, %s59
    %s81 = sphi 0, %s83
    %s84 = sphi 0, %s81
    %s85 = sphi 0, %s84
    %s101 = sphi 0, %s85
  $region4: #{unetr_up_block_plus_dyqkv5_forward.1} parent=0 // loop_header_branch
    %11 = sbr.rel (%p9) target = $region8
  $region5: #{unetr_up_block_plus_dyqkv5_forward.1} parent=0 // loop_body
    %s13 = ssub.s32 %s8, 1
    %s14 = ssub.s32 %s8, 2
    %s21 = sadd.s32 1, %s16
    %p22 = scmp.ge.s32.totalorder %s21, 1
    %s23 = scalar_select %p22, 0, %s21
    %s24 = sadd.s32 1, %s15
    %s25 = scalar_select %p22, %s24, %s15
    %p26 = scmp.ge.s32.totalorder %s25, 2
    %s27 = scalar_select %p26, 0, %s25
    %s28 = ssub.s32 %s15, %s27
    %s29 = ssub.s32 %s16, %s23
    %s30 = sor.u32 %s28, %s29
    %p31 = scmp.eq.s32.totalorder %s30, 0
    %s33 = sadd.s32 %s32, 1
    %s34 = scalar_select %p31, %s32, %s33
    %p37 = pneg %p31
    %p38 = scmp.eq.s32.totalorder %s8, 1
    %p39 = por %p37, %p38
    %p40 = scmp.ne.s32.totalorder %s32, %s35
    %p41 = scmp.eq.s32.totalorder %s8, 0
    %p42 = por %p40, %p41
    %p43 = scmp.ne.s32.totalorder %s32, %s35
    %p44 = scmp.eq.s32.totalorder %s13, 1
    %p45 = por %p43, %p44
    %p46 = scmp.ne.s32.totalorder %s35, %s36
    %p47 = scmp.eq.s32.totalorder %s13, 0
    %p48 = por %p46, %p47
    %p49 = scmp.ne.s32.totalorder %s35, %s36
    %p50 = scmp.eq.s32.totalorder %s14, 1
    %p51 = por %p49, %p50
    %p53 = scmp.ne.s32.totalorder %s36, %s52
    %p54 = scmp.eq.s32.totalorder %s14, 0
    %p55 = por %p53, %p54
    %s57 = sadd.s32 %s56, 1
    %p60 = scmp.eq.s32.totalorder %s8, 1
    %p61 = scmp.ne.s32.totalorder %s56, %s58
    %p62 = scmp.eq.s32.totalorder %s8, 0
    %p63 = por %p61, %p62
    %p64 = scmp.ne.s32.totalorder %s56, %s58
    %p65 = scmp.eq.s32.totalorder %s13, 1
    %p66 = por %p64, %p65
    %p67 = scmp.ne.s32.totalorder %s58, %s59
    %p68 = scmp.eq.s32.totalorder %s13, 0
    %p69 = por %p67, %p68
    %p70 = scmp.ne.s32.totalorder %s58, %s59
    %p71 = scmp.eq.s32.totalorder %s14, 1
    %p72 = por %p70, %p71
    %p74 = scmp.ne.s32.totalorder %s59, %s73
    %p75 = scmp.eq.s32.totalorder %s14, 0
    %p76 = por %p74, %p75
    %s77 = ssub.s32 %s15, %s27
    %s78 = ssub.s32 %s16, %s23
    %s79 = sor.u32 %s77, %s78
    %p80 = scmp.eq.s32.totalorder %s79, 0
    %s82 = sadd.s32 %s81, 1
    %s83 = scalar_select %p80, %s81, %s82
    %p86 = pneg %p80
    %p87 = scmp.eq.s32.totalorder %s8, 1
    %p88 = por %p86, %p87
    %p89 = scmp.ne.s32.totalorder %s81, %s84
    %p90 = scmp.eq.s32.totalorder %s8, 0
    %p91 = por %p89, %p90
    %p92 = scmp.ne.s32.totalorder %s81, %s84
    %p93 = scmp.eq.s32.totalorder %s13, 1
    %p94 = por %p92, %p93
    %p95 = scmp.ne.s32.totalorder %s84, %s85
    %p96 = scmp.eq.s32.totalorder %s13, 0
    %p97 = por %p95, %p96
    %p98 = scmp.ne.s32.totalorder %s84, %s85
    %p99 = scmp.eq.s32.totalorder %s14, 1
    %p100 = por %p98, %p99
    %p102 = scmp.ne.s32.totalorder %s85, %s101
    %p103 = scmp.eq.s32.totalorder %s14, 0
    %p104 = por %p102, %p103
    %p105 = scmp.le.s32.totalorder 1, %s8
    %p106 = scmp.lt.s32.totalorder %s8, 3
    %p107 = pnand %p105, %p106
    %p108 = pneg %p107
    // Predicated region
    $region9: #{unetr_up_block_plus_dyqkv5_forward.1} parent=5 // pred_check
      _
    $region10: #{unetr_up_block_plus_dyqkv5_forward.1} parent=5 // pred_check_branch
      %110 = sbr.rel (%p107) target = $region12
    $region11: #{unetr_up_block_plus_dyqkv5_forward.1} parent=5 // pred_region
      %s111 = ssub.s32 %s8, 1
      // Predicated region
      $region13: #{unetr_up_block_plus_dyqkv5_forward.1} parent=11 // pred_check
        %p112 = pneg %p69
      $region14: #{unetr_up_block_plus_dyqkv5_forward.1} parent=11 // pred_check_branch
        %114 = sbr.rel (%p112) target = $region16
      $region15: #{unetr_up_block_plus_dyqkv5_forward.1} parent=11 // pred_region
        _
      $region16: #{unetr_up_block_plus_dyqkv5_forward.1} parent=11 // pred_fallthru
        _
    $region12: #{unetr_up_block_plus_dyqkv5_forward.1} parent=5 // pred_fallthru
      _
    %p115 = scmp.lt.s32.totalorder %s8, 2
    // Predicated region
    $region17: #{unetr_up_block_plus_dyqkv5_forward.1} parent=5 // pred_check
      %p116 = pneg %p115
    $region18: #{unetr_up_block_plus_dyqkv5_forward.1} parent=5 // pred_check_branch
      %118 = sbr.rel (%p116) target = $region20
    $region19: #{unetr_up_block_plus_dyqkv5_forward.1} parent=5 // pred_region
      // Predicated region
      $region21: #{unetr_up_block_plus_dyqkv5_forward.1} parent=19 // pred_check
        %p119 = pneg %p42
      $region22: #{unetr_up_block_plus_dyqkv5_forward.1} parent=19 // pred_check_branch
        %121 = sbr.rel (%p119) target = $region24
      $region23: #{unetr_up_block_plus_dyqkv5_forward.1} parent=19 // pred_region
        %s122 = smul.u32 2, %s16
        %p123 = scmp.lt.s32.totalorder %s15, 1
        %s124 = scalar_select %p123, %s15, 1
        %p125 = scmp.lt.s32.totalorder %s122, 1
        %s126 = scalar_select %p125, %s122, 1
        %s127 = smul.addr %s124, 2
        %s128 = sadd.s32 %s126, %s127
        %s129 = smul.addr %s128, 8
        %s130 = scalar_lea.vmem %s0, %s129
        %s131 = smul.u32 2, %s16
      $region24: #{unetr_up_block_plus_dyqkv5_forward.1} parent=19 // pred_fallthru
        _
    $region20: #{unetr_up_block_plus_dyqkv5_forward.1} parent=5 // pred_fallthru
      _
    %p132 = scmp.le.s32.totalorder 1, %s8
    %p133 = scmp.lt.s32.totalorder %s8, 3
    %p134 = pnand %p132, %p133
    %p135 = pneg %p134
    // Predicated region
    $region25: #{unetr_up_block_plus_dyqkv5_forward.1} parent=5 // pred_check
      _
    $region26: #{unetr_up_block_plus_dyqkv5_forward.1} parent=5 // pred_check_branch
      %137 = sbr.rel (%p134) target = $region28
    $region27: #{unetr_up_block_plus_dyqkv5_forward.1} parent=5 // pred_region
      %s138 = ssub.s32 %s8, 1
      %s139 = smul.u32 2, %s18
      %p140 = scmp.lt.s32.totalorder %s17, 1
      %s141 = scalar_select %p140, %s17, 1
      %p142 = scmp.lt.s32.totalorder %s139, 1
      %s143 = scalar_select %p142, %s139, 1
      %s144 = smul.addr %s141, 2
      %s145 = sadd.s32 %s143, %s144
      %s146 = smul.addr %s145, 8
      %s147 = scalar_lea.vmem %s0, %s146
      %p148 = pneg %p48
      %p149 = pneg %p45
      %p150 = pneg %p69
      %p151 = pneg %p66
      %p152 = pneg %p97
      %p153 = pneg %p94
      %s154 = smul.u32 2, %s18
      %p155 = scmp.lt.s32.totalorder %s17, 1
      %s156 = scalar_select %p155, %s17, 1
      %p157 = scmp.lt.s32.totalorder %s154, 1
      %s158 = scalar_select %p157, %s154, 1
      %s159 = smul.addr %s156, 4
      %s160 = sadd.s32 %s158, %s159
      %s161 = smul.addr %s160, 8
      %s162 = scalar_lea.vmem %s2, %s161
      %s163 = smul.u32 2, %s18
      %p164 = scmp.lt.s32.totalorder %s17, 1
      %s165 = scalar_select %p164, %s17, 1
      %p166 = scmp.lt.s32.totalorder %s163, 1
      %s167 = scalar_select %p166, %s163, 1
      %s168 = smul.addr %s165, 2
      %s169 = sadd.s32 %s167, %s168
      %s170 = smul.addr %s169, 8
      %s171 = scalar_lea.vmem %s0, %s170
      %s172 = smul.u32 2, %s18
      %s173 = smul.u32 2, %s18
      %p174 = scmp.lt.s32.totalorder %s17, 1
      %s175 = scalar_select %p174, %s17, 1
      %p176 = scmp.lt.s32.totalorder %s173, 1
      %s177 = scalar_select %p176, %s173, 1
      %s178 = smul.addr %s175, 4
      %s179 = sadd.s32 %s177, %s178
      %s180 = smul.addr %s179, 8
      %s181 = scalar_lea.vmem %s2, %s180
      %s182 = smul.u32 2, %s18
      %v183 = vld [vmem:[%s1] sm:$0xff]
      %v184 = vld [vmem:[%s1 + $0x8] sm:$0xff]
      %v185 = vld [vmem:[%s171] sm:$0xff]
      %v186 = vld [vmem:[%s171 + $0x8] sm:$0xff]
      %vm187 = vcmask 64512
      %v189 = vsel %vm187, %v183, 0
      %v192 = vsel %vm187, %v184, 0
      %194 = vmatprep.subr.mxu0 %v186
      %195 = vmatpush1.msra.mxu0 %v185
      %196 = vmatprep.subr.mxu0 0.0
      %197 = vmatpush1.msra.mxu0 0.0
      %198 = vmatprep.subr.mxu0 0.0
      %199 = vmatpush1.msra.mxu0 0.0
      %200 = vmatprep.subr.mxu0 0.0
      %201 = vmatpush1.msra.mxu0 0.0
      %202 = vmatprep.subr.mxu0 0.0
      %203 = vmatpush1.msra.mxu0 0.0
      %204 = vmatprep.subr.mxu0 0.0
      %205 = vmatpush1.msra.mxu0 0.0
      %206 = vmatprep.subr.mxu0 0.0
      %207 = vmatpush1.msra.mxu0 0.0
      %208 = vmatprep.subr.mxu0 0.0
      %209 = vmatpush1.msra.mxu0 0.0
      %210 = vmatprep.subr.mxu0 0.0
      %211 = vmatpush1.msra.mxu0 0.0
      %212 = vmatprep.subr.mxu0 0.0
      %213 = vmatpush1.msra.mxu0 0.0
      %214 = vmatprep.subr.mxu0 0.0
      %215 = vmatpush1.msra.mxu0 0.0
      %216 = vmatprep.subr.mxu0 0.0
      %217 = vmatpush1.msra.mxu0 0.0
      %218 = vmatprep.subr.mxu0 0.0
      %219 = vmatpush1.msra.mxu0 0.0
      %220 = vmatprep.subr.mxu0 0.0
      %221 = vmatpush1.msra.mxu0 0.0
      %222 = vmatprep.subr.mxu0 0.0
      %223 = vmatpush1.msra.mxu0 0.0
      %224 = vmatprep.subr.mxu0 0.0
      %225 = vmatpush1.msra.mxu0 0.0
      %226 = vmatprep.subr.mxu0 0.0
      %227 = vmatpush1.msra.mxu0 0.0
      %228 = vmatprep.subr.mxu0 0.0
      %229 = vmatpush1.msra.mxu0 0.0
      %230 = vmatprep.subr.mxu0 0.0
      %231 = vmatpush1.msra.mxu0 0.0
      %232 = vmatprep.subr.mxu0 0.0
      %233 = vmatpush1.msra.mxu0 0.0
      %234 = vmatprep.subr.mxu0 0.0
      %235 = vmatpush1.msra.mxu0 0.0
      %236 = vmatprep.subr.mxu0 0.0
      %237 = vmatpush1.msra.mxu0 0.0
      %238 = vmatprep.subr.mxu0 0.0
      %239 = vmatpush1.msra.mxu0 0.0
      %240 = vmatprep.subr.mxu0 0.0
      %241 = vmatpush1.msra.mxu0 0.0
      %242 = vmatprep.subr.mxu0 0.0
      %243 = vmatpush1.msra.mxu0 0.0
      %244 = vmatprep.subr.mxu0 0.0
      %245 = vmatpush1.msra.mxu0 0.0
      %246 = vmatprep.subr.mxu0 0.0
      %247 = vmatpush1.msra.mxu0 0.0
      %248 = vmatprep.subr.mxu0 0.0
      %249 = vmatpush1.msra.mxu0 0.0
      %250 = vmatprep.subr.mxu0 0.0
      %251 = vmatpush1.msra.mxu0 0.0
      %252 = vmatprep.subr.mxu0 0.0
      %253 = vmatpush1.msra.mxu0 0.0
      %254 = vmatprep.subr.mxu0 0.0
      %255 = vmatpush1.msra.mxu0 0.0
      %256 = vmatprep.subr.mxu0 0.0
      %257 = vmatpush1.msra.mxu0 0.0
      %258 = vmatprep.mubr.f32.mxu0 0.0
      %259 = vmatmul.mubr.f32.gmra.mrb[0].mxu0 %v189
      %v260 = vpop.f32.mrb[0].mxu0
      %v261 = vadd.f32 0.0, %v260
      %v262 = vpop.f32.mrb[0].mxu0
      %v263 = vadd.f32 0.0, %v262
      %264 = vmatprep.mubr.f32.mxu0 0.0
      %265 = vmatmul.mubr.f32.gmra.mrb[0].mxu0 %v192
      %v266 = vpop.f32.mrb[0].mxu0
      %v267 = vadd.f32 0.0, %v266
      %v268 = vpop.f32.mrb[0].mxu0
      %v269 = vadd.f32 0.0, %v268
      %270 = vdwg.mxu0
      %271 = vst [vmem:[%s181] sm:$0xff] %v261
      %272 = vst [vmem:[%s181 + $0x8] sm:$0xff] %v263
      %273 = vst [vmem:[%s181 + $0x10] sm:$0xff] %v267
      %274 = vst [vmem:[%s181 + $0x18] sm:$0xff] %v269
      %s275 = smul.u32 2, %s18
      %p276 = scmp.lt.s32.totalorder %s17, 1
      %s277 = scalar_select %p276, %s17, 1
      %p278 = scmp.lt.s32.totalorder %s275, 1
      %s279 = scalar_select %p278, %s275, 1
      %s280 = smul.addr %s277, 4
      %s281 = sadd.s32 %s279, %s280
      %s282 = smul.addr %s281, 8
      %s283 = scalar_lea.vmem %s2, %s282
      // Predicated region
      $region29: #{unetr_up_block_plus_dyqkv5_forward.1} parent=27 // pred_check
        %p284 = pneg %p94
      $region30: #{unetr_up_block_plus_dyqkv5_forward.1} parent=27 // pred_check_branch
        %286 = sbr.rel (%p284) target = $region32
      $region31: #{unetr_up_block_plus_dyqkv5_forward.1} parent=27 // pred_region
        %s287 = smul.u32 2, %s18
      $region32: #{unetr_up_block_plus_dyqkv5_forward.1} parent=27 // pred_fallthru
        _
    $region28: #{unetr_up_block_plus_dyqkv5_forward.1} parent=5 // pred_fallthru
      _
    %p288 = scmp.le.s32.totalorder 2, %s8
    // Predicated region
    $region33: #{unetr_up_block_plus_dyqkv5_forward.1} parent=5 // pred_check
      %p289 = pneg %p288
    $region34: #{unetr_up_block_plus_dyqkv5_forward.1} parent=5 // pred_check_branch
      %291 = sbr.rel (%p289) target = $region36
    $region35: #{unetr_up_block_plus_dyqkv5_forward.1} parent=5 // pred_region
      %s292 = ssub.s32 %s8, 2
      // Predicated region
      $region37: #{unetr_up_block_plus_dyqkv5_forward.1} parent=35 // pred_check
        %p293 = pneg %p100
      $region38: #{unetr_up_block_plus_dyqkv5_forward.1} parent=35 // pred_check_branch
        %295 = sbr.rel (%p293) target = $region40
      $region39: #{unetr_up_block_plus_dyqkv5_forward.1} parent=35 // pred_region
        %s296 = smul.u32 2, %s20
        %p297 = scmp.lt.s32.totalorder %s19, 1
        %s298 = scalar_select %p297, %s19, 1
        %p299 = scmp.lt.s32.totalorder %s296, 1
        %s300 = scalar_select %p299, %s296, 1
        %s301 = smul.addr %s298, 4
        %s302 = sadd.s32 %s300, %s301
        %s303 = smul.addr %s302, 8
        %s304 = scalar_lea.vmem %s2, %s303
      $region40: #{unetr_up_block_plus_dyqkv5_forward.1} parent=35 // pred_fallthru
        _
    $region36: #{unetr_up_block_plus_dyqkv5_forward.1} parent=5 // pred_fallthru
      _
  $region6: #{unetr_up_block_plus_dyqkv5_forward.1} parent=0 // loop_footer
    %s12 = sadd.s32 1, %s8
  $region7: #{unetr_up_block_plus_dyqkv5_forward.1} parent=0 // loop_footer_branch
    %7 = sbr.rel target = $region3
  $region8: #{unetr_up_block_plus_dyqkv5_forward.1} parent=0 // loop_exit
    _

</llo_original>
